<compile_context>
chip_gen: v5e
topology: v5e:2x2
jax: 0.10.0
libtpu: 0.0.40
codegen_flags: <defaults>
</compile_context>

<pallas_src>
import jax
import jax.numpy as jnp
from jax.experimental import pallas as pl
from jax.experimental.pallas import tpu as pltpu

_LANE = 128      # vreg lane width
_SUBLANE = 8     # f32 sublane count


def _attention_connection_kernel(param_ref, feat_ref, attn_ref, out_ref):
    # param_ref: (1,) f32 in SMEM.  feat/attn/out: (block_m, 128) VMEM tiles.
    p = param_ref[0]
    a = attn_ref[...].astype(jnp.float32)
    f = feat_ref[...].astype(jnp.float32)
    out_ref[...] = ((a + p) * f).astype(out_ref.dtype)


def attention_connection_forward(feature, attention, param, *, block_m=2048):
    """AttentionConnection.forward: (param + attention) * feature (elementwise)."""
    out_shape = jnp.broadcast_shapes(feature.shape, attention.shape)
    dtype = feature.dtype
    feature = jnp.broadcast_to(feature, out_shape).astype(dtype)
    attention = jnp.broadcast_to(attention, out_shape).astype(dtype)

    f_flat = feature.reshape(-1)
    a_flat = attention.reshape(-1)
    total = f_flat.shape[0]

    # Lane-dense 2-D layout: rows of 128 elements; round rows up to a sublane
    # multiple and then to a whole number of grid blocks.
    rows = pl.cdiv(total, _LANE)
    rows = ((rows + _SUBLANE - 1) // _SUBLANE) * _SUBLANE
    bm = min(block_m, rows)
    rows = ((rows + bm - 1) // bm) * bm
    padded = rows * _LANE
    if padded != total:
        f_flat = jnp.pad(f_flat, (0, padded - total))
        a_flat = jnp.pad(a_flat, (0, padded - total))
    f2 = f_flat.reshape(rows, _LANE)
    a2 = a_flat.reshape(rows, _LANE)

    grid = (rows // bm,)
    out2 = pl.pallas_call(
        _attention_connection_kernel,
        out_shape=jax.ShapeDtypeStruct((rows, _LANE), dtype),
        grid=grid,
        in_specs=[
            # scalar param: whole array, scalar memory
            pl.BlockSpec(memory_space=pltpu.MemorySpace.SMEM),
            pl.BlockSpec((bm, _LANE), lambda i: (i, 0)),   # feature tile
            pl.BlockSpec((bm, _LANE), lambda i: (i, 0)),   # attention tile
        ],
        out_specs=pl.BlockSpec((bm, _LANE), lambda i: (i, 0)),
        compiler_params=pltpu.CompilerParams(
            dimension_semantics=("parallel",),   # shard row blocks across v7x's 2 TCs
        ),
    )(param.reshape(1).astype(jnp.float32), f2, a2)

    out_flat = out2.reshape(-1)
    if padded != total:
        out_flat = out_flat[:total]
    return out_flat.reshape(out_shape)


if __name__ == "__main__":
    key = jax.random.PRNGKey(0)
    k_f, k_a = jax.random.split(key)
    N, C, H, W = 2, 4, 16, 16
    feature = jax.random.normal(k_f, (N, C, H, W), jnp.float32)
    attention = jax.random.normal(k_a, (N, C, H, W), jnp.float32)
    # nn.Parameter(torch.Tensor(1).fill_(factor)) with the default factor=1.0
    param = jnp.full((1,), 1.0, jnp.float32)

    out = attention_connection_forward(feature, attention, param)
    jax.block_until_ready(out)

    ref = (param + attention) * feature
    assert out.shape == ref.shape
    assert jnp.allclose(out, ref, atol=1e-6, rtol=1e-6)
    print("KERNEL_OK")
</pallas_src>

<mosaic_0001>
module attributes {stable_mosaic.version = 11 : i64} {
  func.func @_attention_connection_kernel(%arg0: i32, %arg1: memref<1xf32, #tpu.memory_space<smem>>, %arg2: memref<16x128xf32, #tpu.memory_space<vmem>>, %arg3: memref<16x128xf32, #tpu.memory_space<vmem>>, %arg4: memref<16x128xf32, #tpu.memory_space<vmem>>) attributes {dimension_semantics = [#tpu.dimension_semantics<parallel>], iteration_bounds = array<i64: 1>, scalar_prefetch = 0 : i64, scratch_operands = 0 : i64, tpu.core_type = #tpu.core_type<tc>, window_params = [{transform_indices = @transform_0, window_bounds = array<i64: 1>}, {transform_indices = @transform_1, window_bounds = array<i64: 16, 128>}, {transform_indices = @transform_2, window_bounds = array<i64: 16, 128>}, {transform_indices = @transform_3, window_bounds = array<i64: 16, 128>}]} {
    %c0 = arith.constant 0 : index
    %0 = memref.load %arg1[%c0] : memref<1xf32, #tpu.memory_space<smem>>
    %c0_0 = arith.constant 0 : index
    %c0_1 = arith.constant 0 : index
    %1 = vector.load %arg3[%c0_0, %c0_1] : memref<16x128xf32, #tpu.memory_space<vmem>>, vector<16x128xf32>
    %c0_2 = arith.constant 0 : index
    %c0_3 = arith.constant 0 : index
    %2 = vector.load %arg2[%c0_2, %c0_3] : memref<16x128xf32, #tpu.memory_space<vmem>>, vector<16x128xf32>
    %3 = vector.broadcast %0 : f32 to vector<16x128xf32>
    %4 = arith.addf %1, %3 : vector<16x128xf32>
    %5 = arith.mulf %4, %2 : vector<16x128xf32>
    %c0_4 = arith.constant 0 : index
    %c0_5 = arith.constant 0 : index
    %6 = vector.load %arg4[%c0_4, %c0_5] : memref<16x128xf32, #tpu.memory_space<vmem>>, vector<16x128xf32>
    tpu.vector_store %arg4[%c0_4, %c0_5], %5 {strides = array<i32>} : memref<16x128xf32, #tpu.memory_space<vmem>>, vector<16x128xf32>,
    return
  }
  func.func @transform_0(%arg0: i32) -> i32 {
    %c0_i32 = arith.constant 0 : i32
    %c0_i32_0 = arith.constant 0 : i32
    return %c0_i32 : i32
  }
  func.func @transform_1(%arg0: i32) -> (i32, i32) {
    %c0_i32 = arith.constant 0 : i32
    %c0_i32_0 = arith.constant 0 : i32
    return %arg0, %c0_i32 : i32, i32
  }
  func.func @transform_2(%arg0: i32) -> (i32, i32) {
    %c0_i32 = arith.constant 0 : i32
    %c0_i32_0 = arith.constant 0 : i32
    return %arg0, %c0_i32 : i32, i32
  }
  func.func @transform_3(%arg0: i32) -> (i32, i32) {
    %c0_i32 = arith.constant 0 : i32
    %c0_i32_0 = arith.constant 0 : i32
    return %arg0, %c0_i32 : i32, i32
  }
}

</mosaic_0001>

<llo_original>
// kernel: tpu_custom_call.1
$region0: #{tpu_custom_call.1}
  #allocation0 [shape = 'u32[]', space=smem, size = 0x4, offset = 0x4, fixed_abs, tag = 'smem constant byte address 0x4 - core index']
  #allocation1 [shape = 'u32[72,128]{1,0:T(1,128)}', space=vmem, size = 0x9000, scoped, tag = 'internal scratch']
  #allocation2 [shape = 'f32[1]{0:T(128)S(6)}', space=smem, size = 0x200, scoped, tag = 'scoped memory for tpu_custom_call.1']
  %s0 = inlined_call_operand.<no memory space> [shape: f32[1], index: 0, kind: input, shape index: {}]
  %s1 = inlined_call_operand.hbm [shape: f32[16,128], index: 1, kind: input, shape index: {}]
  %s2 = inlined_call_operand.hbm [shape: f32[16,128], index: 2, kind: input, shape index: {}]
  %s3 = inlined_call_operand.hbm [shape: f32[16,128], index: 3, kind: output, shape index: {}]
  %s4 = sld [smem:[#allocation0]]
  $region30: #{tpu_custom_call.1} parent=0
    _
  %s6 = ssub.s32 1, %s4
  %s7 = scalar_select 0, %s6, %s4
  %8 = sst [smem:[#allocation2]] %s0
  $region1: #{tpu_custom_call.1} parent=0
    #allocation3 [shape = 'u8[8192]{0}', space=vmem, size = 0x2000, scoped, tag = 'input window, operand 1, single buffered']
    #allocation4 [shape = 's32[1]{0}', space=sflag, size = 0x4, scoped, tag = 'scoped memory for tpu_custom_call.1']
    #allocation5 [shape = 's32[1]{0}', space=sflag, size = 0x4, scoped, tag = 'scoped memory for tpu_custom_call.1']
    #allocation6 [shape = 'u8[8192]{0}', space=vmem, size = 0x2000, scoped, tag = 'input window, operand 2, single buffered']
    #allocation7 [shape = 's32[1]{0}', space=sflag, size = 0x4, scoped, tag = 'scoped memory for tpu_custom_call.1']
    #allocation8 [shape = 'u8[8192]{0}', space=vmem, size = 0x2000, scoped, tag = 'output window, operand 0, single buffered']
    %9 = vsyncpa [#allocation4], 0
    %10 = vsyncpa [#allocation7], 0
    %11 = vsyncpa [#allocation5], 0
    // Predicated region
    $region2: #{tpu_custom_call.1} parent=1 // pred_check
      _
    $region3: #{tpu_custom_call.1} parent=1 // pred_check_branch
      %13 = sbr.rel (0) target = $region5
    $region4: #{tpu_custom_call.1} parent=1 // pred_region
      _
    $region5: #{tpu_custom_call.1} parent=1 // pred_fallthru
      _
    // Predicated region
    $region6: #{tpu_custom_call.1} parent=1 // pred_check
      _
    $region7: #{tpu_custom_call.1} parent=1 // pred_check_branch
      %15 = sbr.rel (0) target = $region9
    $region8: #{tpu_custom_call.1} parent=1 // pred_region
      %17 = vsyncadd [#allocation4], 0
      %s18 = sshll.u32 %s1, 4
      %s19 = int_to_ptr.hbm [resolvable:$true] %s18
      %s20 = sshll.u32 [#allocation3], 4
      %s21 = int_to_ptr.vmem [resolvable:$true] %s20
      %26 = dma.hbm_to_vmem [thread:$0]  %s19, 256, %s21, [#allocation4], 128, 128, 8
    $region9: #{tpu_custom_call.1} parent=1 // pred_fallthru
      _
    // Predicated region
    $region10: #{tpu_custom_call.1} parent=1 // pred_check
      _
    $region11: #{tpu_custom_call.1} parent=1 // pred_check_branch
      %28 = sbr.rel (0) target = $region13
    $region12: #{tpu_custom_call.1} parent=1 // pred_region
      %30 = vsyncadd [#allocation7], 0
      %s31 = sshll.u32 %s2, 4
      %s32 = int_to_ptr.hbm [resolvable:$true] %s31
      %s33 = sshll.u32 [#allocation6], 4
      %s34 = int_to_ptr.vmem [resolvable:$true] %s33
      %39 = dma.hbm_to_vmem [thread:$0]  %s32, 256, %s34, [#allocation7], 128, 128, 8
    $region13: #{tpu_custom_call.1} parent=1 // pred_fallthru
      _
    // Predicated region
    $region14: #{tpu_custom_call.1} parent=1 // pred_check
      _
    $region15: #{tpu_custom_call.1} parent=1 // pred_check_branch
      %41 = sbr.rel (0) target = $region17
    $region16: #{tpu_custom_call.1} parent=1 // pred_region
      %43 = dma.done [#allocation4], 256
    $region17: #{tpu_custom_call.1} parent=1 // pred_fallthru
      _
    // Predicated region
    $region18: #{tpu_custom_call.1} parent=1 // pred_check
      _
    $region19: #{tpu_custom_call.1} parent=1 // pred_check_branch
      %45 = sbr.rel (0) target = $region21
    $region20: #{tpu_custom_call.1} parent=1 // pred_region
      %47 = dma.done [#allocation7], 256
    $region21: #{tpu_custom_call.1} parent=1 // pred_fallthru
      _
    %s48 = sld [smem:[#allocation2]]
    %v49 = vld [vmem:[#allocation6] sm:$0xff]
    %v50 = vld [vmem:[#allocation6 + $0x8] sm:$0xff]
    %v51 = vld [vmem:[#allocation3] sm:$0xff]
    %v52 = vld [vmem:[#allocation3 + $0x8] sm:$0xff]
    %v53 = vstv %s48
    %v54 = vadd.f32 %v49, %v53
    %v55 = vadd.f32 %v50, %v53
    %v56 = vmul.f32 %v54, %v51
    %v57 = vmul.f32 %v55, %v52
    %58 = vst [vmem:[#allocation8] sm:$0xff] %v56
    %59 = vst [vmem:[#allocation8 + $0x8] sm:$0xff] %v57
    // Predicated region
    $region22: #{tpu_custom_call.1} parent=1 // pred_check
      _
    $region23: #{tpu_custom_call.1} parent=1 // pred_check_branch
      %61 = sbr.rel (0) target = $region25
    $region24: #{tpu_custom_call.1} parent=1 // pred_region
      %63 = vsyncadd [#allocation5], 0
      %s64 = sshll.u32 [#allocation8], 4
      %s65 = int_to_ptr.vmem [resolvable:$true] %s64
      %s66 = sshll.u32 %s3, 4
      %s67 = int_to_ptr.hbm [resolvable:$true] %s66
      %72 = dma.vmem_to_hbm [thread:$0]  %s65, 256, %s67, [#allocation5], 128, 128, 8
    $region25: #{tpu_custom_call.1} parent=1 // pred_fallthru
      _
    // Predicated region
    $region26: #{tpu_custom_call.1} parent=1 // pred_check
      _
    $region27: #{tpu_custom_call.1} parent=1 // pred_check_branch
      %74 = sbr.rel (0) target = $region29
    $region28: #{tpu_custom_call.1} parent=1 // pred_region
      %76 = dma.done [#allocation5], 256
    $region29: #{tpu_custom_call.1} parent=1 // pred_fallthru
      _
    %77 = vsyncpa [#allocation4], 1
    %78 = vsyncpa [#allocation7], 1
    %79 = vsyncpa [#allocation5], 1

</llo_original>
